<compile_context>
chip_gen: v7x
topology: tpu7x:2x2x1
jax: 0.10.0
libtpu: 0.0.40
codegen_flags: <defaults>
</compile_context>

<pallas_src>
import functools

import jax
import jax.numpy as jnp
from jax.experimental import pallas as pl
from jax.experimental.pallas import tpu as pltpu


_TARGET_TILE_BYTES = 4 * 1024 * 1024      # target bytes per input block
_FAST_PATH_VMEM_BYTES = 40 * 1024 * 1024  # max VMEM footprint for the fast path
_VMEM_LIMIT_CAP = 48 * 1024 * 1024        # safe on v5e/v6e (128 MiB) and v7x (64 MiB)


def _sublane_pack(dtype):
    # 8 for f32, 16 for bf16, 32 for int8/fp8 (sublane packing factor).
    return max(8, 32 // jnp.dtype(dtype).itemsize)


def _vmem_limit(need_bytes):
    need = need_bytes + (1 << 20)                      # internal-scratch margin
    return int(min(_VMEM_LIMIT_CAP, max(16 << 20, need + need // 4)))


# --------------------------------------------------------------------------
# Fast path: whole reduction row(s) in a single VMEM tile.
# --------------------------------------------------------------------------
def _mvn_rowtile_kernel(x_ref, o_ref, *, eps, normalize_variance, n):
    x = x_ref[...].astype(jnp.float32)
    mean = jnp.sum(x, axis=-1, keepdims=True) * (1.0 / n)
    x = x - mean                       # reuse x: only one f32 tile stays live
    if normalize_variance:
        # torch.Tensor.std is unbiased (N-1); N == 1 yields NaN like torch.
        inv_nm1 = (1.0 / (n - 1.0)) if n > 1.0 else float("nan")
        var = jnp.sum(x * x, axis=-1, keepdims=True) * inv_nm1
        # Per-row reciprocal on the EUP (approx) instead of a full-tile divide.
        inv = pl.reciprocal(jnp.sqrt(var) + eps, approx=True)
        x = x * inv
    o_ref[...] = x.astype(o_ref.dtype)


def _mvn_rowgrid(x2, rows, n, *, eps, normalize_variance, target_tile_bytes):
    itemsize = x2.dtype.itemsize
    pack = _sublane_pack(x2.dtype)

    if rows <= pack:
        br = rows                       # block dim == full array dim: legal
    else:
        # Multiple of the sublane pack, sized for ~target_tile_bytes per block.
        br = max(pack, (target_tile_bytes // (n * itemsize)) // pack * pack)
        br = min(br, pack * pl.cdiv(rows, pack))
        # Prefer >=2 grid steps so v7x's two TensorCores both get work.
        if pl.cdiv(rows, br) < 2 and pl.cdiv(rows, pack) >= 2:
            br = pack * pl.cdiv(pl.cdiv(rows, pack), 2)
    grid0 = pl.cdiv(rows, br)

    # VMEM: double-buffered in + out blocks plus f32 working copy (+ margin).
    tile = br * n * itemsize
    need = 4 * tile + 2 * br * n * 4
    vmem_limit = _vmem_limit(need)

    kernel = functools.partial(
        _mvn_rowtile_kernel, eps=float(eps),
        normalize_variance=normalize_variance, n=float(n))

    return pl.pallas_call(
        kernel,
        out_shape=jax.ShapeDtypeStruct((rows, n), x2.dtype),
        grid_spec=pltpu.PrefetchScalarGridSpec(
            num_scalar_prefetch=0,
            grid=(grid0,),
            in_specs=[pl.BlockSpec((br, n), lambda i: (i, 0))],
            out_specs=pl.BlockSpec((br, n), lambda i: (i, 0)),
        ),
        compiler_params=pltpu.CompilerParams(
            dimension_semantics=("parallel",),
            vmem_limit_bytes=vmem_limit,
        ),
        cost_estimate=pl.CostEstimate(
            flops=5 * rows * n,
            transcendentals=rows,
            bytes_accessed=2 * rows * n * itemsize),
    )(x2)


# --------------------------------------------------------------------------
# Fallback path: rows too big for VMEM -> column-tiled two-pass scheme.
# --------------------------------------------------------------------------
def _mvn_stats_kernel(x_ref, s_ref, ss_ref, *, n, tn, mask_cols):
    j = pl.program_id(1)

    @pl.when(j == 0)
    def _init():
        s_ref[...] = jnp.zeros_like(s_ref)
        ss_ref[...] = jnp.zeros_like(ss_ref)

    x = x_ref[...].astype(jnp.float32)
    if mask_cols:
        # Exclude out-of-bounds columns of the last (partial) column block.
        col = jax.lax.broadcasted_iota(jnp.int32, x.shape, 1) + j * tn
        x = jnp.where(col < n, x, 0.0)
    s_ref[...] += jnp.sum(x, axis=-1, keepdims=True)
    ss_ref[...] += jnp.sum(x * x, axis=-1, keepdims=True)


def _mvn_apply_kernel(x_ref, m_ref, sc_ref, o_ref):
    x = x_ref[...].astype(jnp.float32)
    o_ref[...] = ((x - m_ref[...]) * sc_ref[...]).astype(o_ref.dtype)


def _mvn_colgrid(x2, rows, n, *, eps, normalize_variance, target_tile_bytes,
                 tile_cols=None):
    itemsize = x2.dtype.itemsize
    pack = _sublane_pack(x2.dtype)
    br = rows if rows <= pack else pack
    if tile_cols is None:
        tn = max(128, (target_tile_bytes // (br * itemsize)) // 128 * 128)
    else:
        tn = int(tile_cols)
    tn = min(tn, pl.cdiv(n, 128) * 128)
    row_steps = pl.cdiv(rows, br)
    col_steps = pl.cdiv(n, tn)
    mask_cols = (n % tn) != 0

    # Pass 1: per-row sum / sum-of-squares, accumulated across column blocks.
    stats_kernel = functools.partial(
        _mvn_stats_kernel, n=n, tn=tn, mask_cols=mask_cols)
    s, ss = pl.pallas_call(
        stats_kernel,
        out_shape=(jax.ShapeDtypeStruct((rows, 1), jnp.float32),
                   jax.ShapeDtypeStruct((rows, 1), jnp.float32)),
        grid_spec=pltpu.PrefetchScalarGridSpec(
            num_scalar_prefetch=0,
            grid=(row_steps, col_steps),
            in_specs=[pl.BlockSpec((br, tn), lambda i, j: (i, j))],
            out_specs=(pl.BlockSpec((br, 1), lambda i, j: (i, 0)),
                       pl.BlockSpec((br, 1), lambda i, j: (i, 0))),
        ),
        compiler_params=pltpu.CompilerParams(
            dimension_semantics=("parallel", "arbitrary"),
            vmem_limit_bytes=_vmem_limit(2 * br * tn * itemsize
                                         + 2 * br * tn * 4),
        ),
        cost_estimate=pl.CostEstimate(
            flops=3 * rows * n, transcendentals=0,
            bytes_accessed=rows * n * itemsize),
    )(x2)

    nf = float(n)
    mean = s * (1.0 / nf)
    if normalize_variance:
        # Single-sweep variance; clamp tiny negatives from rounding.
        var = jnp.maximum((ss - nf * mean * mean) * (1.0 / (nf - 1.0)), 0.0)
        scale = 1.0 / (jnp.sqrt(var) + eps)
    else:
        scale = jnp.ones_like(mean)

    # Pass 2: apply (x - mean) * scale, lane-dense tiles.
    out2 = pl.pallas_call(
        _mvn_apply_kernel,
        out_shape=jax.ShapeDtypeStruct((rows, n), x2.dtype),
        grid_spec=pltpu.PrefetchScalarGridSpec(
            num_scalar_prefetch=0,
            grid=(row_steps, col_steps),
            in_specs=[pl.BlockSpec((br, tn), lambda i, j: (i, j)),
                      pl.BlockSpec((br, 1), lambda i, j: (i, 0)),
                      pl.BlockSpec((br, 1), lambda i, j: (i, 0))],
            out_specs=pl.BlockSpec((br, tn), lambda i, j: (i, j)),
        ),
        compiler_params=pltpu.CompilerParams(
            dimension_semantics=("parallel", "parallel"),
            vmem_limit_bytes=_vmem_limit(4 * br * tn * itemsize
                                         + 2 * br * tn * 4),
        ),
        cost_estimate=pl.CostEstimate(
            flops=2 * rows * n, transcendentals=0,
            bytes_accessed=2 * rows * n * itemsize),
    )(x2, mean, scale)
    return out2


# --------------------------------------------------------------------------
# Public wrapper.
# --------------------------------------------------------------------------
def mvn(x, *, normalize_variance=True, across_channels=False, eps=1e-9,
        target_tile_bytes=_TARGET_TILE_BYTES,
        _force_fallback=False, _tile_cols=None):
    """MVN forward. x: (B, C, H, W)."""
    b, c, h, w = x.shape
    if across_channels:
        if b == 1:
            rows, n = 1, b * c * h * w
        else:
            rows, n = b, c * h * w
    else:
        rows, n = b * c, h * w

    x2 = x.reshape(rows, n)
    itemsize = x.dtype.itemsize
    pack = _sublane_pack(x.dtype)

    # Can the minimum legal row block (full sublane pack, or all rows if fewer)
    # fit VMEM with double-buffered in/out plus the f32 working copy?
    br_min = rows if rows <= pack else pack
    need_min = 4 * br_min * n * itemsize + 2 * br_min * n * 4
    use_fallback = _force_fallback or (need_min > _FAST_PATH_VMEM_BYTES)

    if use_fallback:
        out2 = _mvn_colgrid(x2, rows, n, eps=eps,
                            normalize_variance=normalize_variance,
                            target_tile_bytes=target_tile_bytes,
                            tile_cols=_tile_cols)
    else:
        out2 = _mvn_rowgrid(x2, rows, n, eps=eps,
                            normalize_variance=normalize_variance,
                            target_tile_bytes=target_tile_bytes)
    return out2.reshape(b, c, h, w)


# --------------------------------------------------------------------------
# Pure-JAX reference + self-test.
# --------------------------------------------------------------------------
def _mvn_ref(x, *, normalize_variance=True, across_channels=False, eps=1e-9):
    b, c, h, w = x.shape
    if across_channels:
        if b == 1:
            xr, shape = x.reshape(1, -1), (1, 1, 1, 1)
        else:
            xr, shape = x.reshape(b, -1), (b, 1, 1, 1)
    else:
        xr, shape = x.reshape(b * c, -1), (b, c, 1, 1)
    mean = jnp.mean(xr, axis=1).reshape(shape)
    if normalize_variance:
        std = jnp.std(xr, axis=1, ddof=1).reshape(shape)
        return (x - mean) / (std + eps)
    return x - mean


if __name__ == "__main__":
    key = jax.random.PRNGKey(0)
    x = jax.random.normal(key, (2, 4, 16, 16), dtype=jnp.float32)

    def check(out, ref):
        assert out.shape == ref.shape and out.dtype == ref.dtype
        # approx reciprocal (EUP) trades a little precision for VPU slots.
        assert jnp.allclose(out, ref, atol=5e-3, rtol=5e-3)

    # Fast (whole-row) path, default config.
    out = jax.block_until_ready(mvn(x))
    check(out, _mvn_ref(x))

    # Mean-only normalization.
    out = jax.block_until_ready(mvn(x, normalize_variance=False))
    check(out, _mvn_ref(x, normalize_variance=False))

    # across_channels, batch > 1 and batch == 1.
    out = jax.block_until_ready(mvn(x, across_channels=True))
    check(out, _mvn_ref(x, across_channels=True))
    x1 = x[:1]
    out = jax.block_until_ready(mvn(x1, across_channels=True))
    check(out, _mvn_ref(x1, across_channels=True))

    # Column-tiled fallback path (forced; exercises the accumulator passes).
    out = jax.block_until_ready(mvn(x, _force_fallback=True, _tile_cols=128))
    check(out, _mvn_ref(x))

    print("KERNEL_OK")
</pallas_src>

<mosaic_0001>
module attributes {stable_mosaic.version = 11 : i64} {
  func.func @_mvn_rowtile_kernel(%arg0: i32, %arg1: memref<8x256xf32, #tpu.memory_space<vmem>>, %arg2: memref<8x256xf32, #tpu.memory_space<vmem>>) attributes {dimension_semantics = [#tpu.dimension_semantics<parallel>], iteration_bounds = array<i64: 1>, scalar_prefetch = 0 : i64, scratch_operands = 0 : i64, tpu.core_type = #tpu.core_type<tc>, window_params = [{transform_indices = @transform_0, window_bounds = array<i64: 8, 256>}, {transform_indices = @transform_1, window_bounds = array<i64: 8, 256>}]} {
    %c0 = arith.constant 0 : index
    %c0_0 = arith.constant 0 : index
    %0 = vector.load %arg1[%c0, %c0_0] : memref<8x256xf32, #tpu.memory_space<vmem>>, vector<8x256xf32>
    %cst = arith.constant dense<0.000000e+00> : vector<8xf32>
    %1 = vector.multi_reduction <add>, %0, %cst [1] : vector<8x256xf32> to vector<8xf32>
    %2 = vector.shape_cast %1 : vector<8xf32> to vector<8x1xf32>
    %cst_1 = arith.constant 3.906250e-03 : f32
    %3 = vector.broadcast %cst_1 : f32 to vector<8x1xf32>
    %4 = arith.mulf %2, %3 : vector<8x1xf32>
    %5 = vector.broadcast %4 : vector<8x1xf32> to vector<8x256xf32>
    %6 = arith.subf %0, %5 : vector<8x256xf32>
    %7 = arith.mulf %6, %6 : vector<8x256xf32>
    %cst_2 = arith.constant dense<0.000000e+00> : vector<8xf32>
    %8 = vector.multi_reduction <add>, %7, %cst_2 [1] : vector<8x256xf32> to vector<8xf32>
    %9 = vector.shape_cast %8 : vector<8xf32> to vector<8x1xf32>
    %cst_3 = arith.constant 0.00392156886 : f32
    %10 = vector.broadcast %cst_3 : f32 to vector<8x1xf32>
    %11 = arith.mulf %9, %10 : vector<8x1xf32>
    %12 = math.sqrt %11 : vector<8x1xf32>
    %cst_4 = arith.constant 9.99999971E-10 : f32
    %13 = vector.broadcast %cst_4 : f32 to vector<8x1xf32>
    %14 = arith.addf %12, %13 : vector<8x1xf32>
    %15 = tpu.reciprocal %14 {approx = true} : vector<8x1xf32> -> vector<8x1xf32>
    %16 = vector.broadcast %15 : vector<8x1xf32> to vector<8x256xf32>
    %17 = arith.mulf %6, %16 : vector<8x256xf32>
    %c0_5 = arith.constant 0 : index
    %c0_6 = arith.constant 0 : index
    %18 = vector.load %arg2[%c0_5, %c0_6] : memref<8x256xf32, #tpu.memory_space<vmem>>, vector<8x256xf32>
    tpu.vector_store %arg2[%c0_5, %c0_6], %17 {strides = array<i32>} : memref<8x256xf32, #tpu.memory_space<vmem>>, vector<8x256xf32>,
    return
  }
  func.func @transform_0(%arg0: i32) -> (i32, i32) {
    %c0_i32 = arith.constant 0 : i32
    %c0_i32_0 = arith.constant 0 : i32
    return %arg0, %c0_i32 : i32, i32
  }
  func.func @transform_1(%arg0: i32) -> (i32, i32) {
    %c0_i32 = arith.constant 0 : i32
    %c0_i32_0 = arith.constant 0 : i32
    return %arg0, %c0_i32 : i32, i32
  }
}

</mosaic_0001>

<llo_original>
// kernel: tpu_custom_call.1
$region0: #{tpu_custom_call.1}
  #allocation0 [shape = 'u32[]', space=smem, size = 0x4, offset = 0x4, fixed_abs, tag = 'smem constant byte address 0x4 - core index']
  #allocation1 [shape = 'u32[144,128]{1,0:T(1,128)}', space=vmem, size = 0x12000, scoped, tag = 'internal scratch']
  %s0 = inlined_call_operand.hbm [shape: f32[8,256], index: 0, kind: input, shape index: {}]
  %s1 = inlined_call_operand.hbm [shape: f32[8,256], index: 1, kind: output, shape index: {}]
  %s2 = sld [smem:[#allocation0]]
  $region18: #{tpu_custom_call.1} parent=0
    _
  %s4 = ssub.s32 1, %s2
  %s5 = scalar_select 0, %s4, %s2
  $region1: #{tpu_custom_call.1} parent=0
    #allocation2 [shape = 'u8[8192]{0}', space=vmem, size = 0x2000, scoped, tag = 'input window, operand 0, single buffered']
    #allocation3 [shape = 's32[1]{0}', space=sflag, size = 0x4, scoped, tag = 'scoped memory for tpu_custom_call.1']
    #allocation4 [shape = 's32[1]{0}', space=sflag, size = 0x4, scoped, tag = 'scoped memory for tpu_custom_call.1']
    #allocation5 [shape = 'u8[8192]{0}', space=vmem, size = 0x2000, scoped, tag = 'output window, operand 0, single buffered']
    %6 = vsyncpa [#allocation3], 0
    %7 = vsyncpa [#allocation4], 0
    // Predicated region
    $region2: #{tpu_custom_call.1} parent=1 // pred_check
      _
    $region3: #{tpu_custom_call.1} parent=1 // pred_check_branch
      %9 = sbr.rel (0) target = $region5
    $region4: #{tpu_custom_call.1} parent=1 // pred_region
      %s11 = ssub.s32 256, 256
      %12 = vsyncadd [#allocation3], %s11
      %s14 = sshll.u32 [#allocation2], 4
      %s15 = int_to_ptr.vmem [resolvable:$true] %s14
      %17 = dma.hbm_to_vmem [thread:$0]  %s0, 256, %s15, [#allocation3]
    $region5: #{tpu_custom_call.1} parent=1 // pred_fallthru
      _
    // Predicated region
    $region6: #{tpu_custom_call.1} parent=1 // pred_check
      _
    $region7: #{tpu_custom_call.1} parent=1 // pred_check_branch
      %19 = sbr.rel (0) target = $region9
    $region8: #{tpu_custom_call.1} parent=1 // pred_region
      %20 = dma.done [#allocation3], 256
    $region9: #{tpu_custom_call.1} parent=1 // pred_fallthru
      _
    %v21 = vld [vmem:[#allocation2] sm:$0xff]
    %v22 = vld [vmem:[#allocation2 + $0x8] sm:$0xff]
    %v23 = vadd.f32 %v21, %v22
    %24 = vadd.xlane.f32.xlu0 %v23
    %v25 = vpop.xlane.xlu0 %24
    %v26 = vmul.f32 %v25, 0.00390625
    %v27 = vsub.f32 %v21, %v26
    %v28 = vsub.f32 %v22, %v26
    %v29 = vmul.f32 %v27, %v27
    %v30 = vmul.f32 %v28, %v28
    %v31 = vadd.f32 %v29, %v30
    %32 = vadd.xlane.f32.xlu0 %v31
    %v33 = vpop.xlane.xlu0 %32
    %v34 = vmul.f32 %v33, 0.003921569
    %v35 = vrsqrt.pop %v34
    %v36 = vmul.f32 %v34, %v35
    %vm37 = vcmp.eq.f32.partialorder %v34, inf
    %v38 = vsel %vm37, %v34, %v36
    %vm39 = vcmp.eq.f32.partialorder %v34, 0.0
    %v40 = vand.u32 %v34, 2147483648
    %v41 = vsel %vm39, %v40, %v38
    %v42 = vadd.f32 %v41, 1e-09
    %v43 = vrcp.pop %v42
    %v44 = vmul.f32 %v27, %v43
    %v45 = vmul.f32 %v28, %v43
    %46 = vst [vmem:[#allocation5] sm:$0xff] %v44
    %47 = vst [vmem:[#allocation5 + $0x8] sm:$0xff] %v45
    // Predicated region
    $region10: #{tpu_custom_call.1} parent=1 // pred_check
      _
    $region11: #{tpu_custom_call.1} parent=1 // pred_check_branch
      %49 = sbr.rel (0) target = $region13
    $region12: #{tpu_custom_call.1} parent=1 // pred_region
      %s51 = ssub.s32 256, 256
      %52 = vsyncadd [#allocation4], %s51
      %s54 = sshll.u32 [#allocation5], 4
      %s55 = int_to_ptr.vmem [resolvable:$true] %s54
      %57 = dma.vmem_to_hbm [thread:$0]  %s55, 256, %s1, [#allocation4]
    $region13: #{tpu_custom_call.1} parent=1 // pred_fallthru
      _
    // Predicated region
    $region14: #{tpu_custom_call.1} parent=1 // pred_check
      _
    $region15: #{tpu_custom_call.1} parent=1 // pred_check_branch
      %59 = sbr.rel (0) target = $region17
    $region16: #{tpu_custom_call.1} parent=1 // pred_region
      %60 = dma.done [#allocation4], 256
    $region17: #{tpu_custom_call.1} parent=1 // pred_fallthru
      _
    %61 = vsyncpa [#allocation3], 1
    %62 = vsyncpa [#allocation4], 1

</llo_original>
